<compile_context>
chip_gen: v6e
topology: v6e:2x2x1
jax: 0.10.0
libtpu: 0.0.40
codegen_flags: <defaults>
</compile_context>

<pallas_src>
import functools

import jax
import jax.numpy as jnp
from jax.experimental import pallas as pl
from jax.experimental.pallas import tpu as pltpu

PAD = 128          # lane width every hidden dim is padded to
_MAX_TILE = 2048   # max batch rows per grid step


def _cdiv(a, b):
    return -(-a // b)


def _round_up(x, m):
    return _cdiv(x, m) * m


def _num_tensorcores_per_chip():
    """Best-effort detection of chips with 2 TensorCores (v7x, v4/v5p megacore)."""
    try:
        kind = jax.devices()[0].device_kind.lower()
    except Exception:
        return 1
    if "v7" in kind or "v4" in kind or "v5p" in kind:
        return 2
    return 1


def _choose_tiling(batch, num_tc):
    """Balanced tiling: minimal padding, tiles capped at _MAX_TILE, >=1 tile per TC."""
    grid = max(1, _cdiv(batch, _MAX_TILE))
    if num_tc >= 2 and batch >= 8 * num_tc:
        grid = max(grid, num_tc)
    tile_b = _round_up(_cdiv(batch, grid), 8)   # f32 sublane multiple
    b_pad = tile_b * grid
    return tile_b, b_pad, grid


def _dqn_mlp_kernel(x_ref, w1_ref, wpack_ref, bpack_ref, out_ref, *, num_actions):
    """Fused 5-layer MLP; hidden widths zero-padded to 128; bf16 MXU, f32 accumulate."""
    h = x_ref[...].astype(jnp.bfloat16)  # [TB, num_obs]

    # layer 1: num_obs -> 128, +bias (f32), ReLU
    h = jnp.dot(h, w1_ref[...], preferred_element_type=jnp.float32) + bpack_ref[0]
    h = jnp.maximum(h, 0.0)

    # layers 2..4 (ReLU) and the linear head, from the packed [4,128,128] stack.
    # Static indices -> zero-cost views into the VMEM-resident parameter slab.
    for li in range(4):
        h = jnp.dot(h.astype(jnp.bfloat16), wpack_ref[li],
                    preferred_element_type=jnp.float32) + bpack_ref[li + 1]
        if li < 3:
            h = jnp.maximum(h, 0.0)

    # Narrow store: only the first num_actions lanes are meaningful Q-values.
    out_ref[...] = h[:, :num_actions].astype(out_ref.dtype)


@functools.partial(jax.jit, static_argnames=("num_actions",))
def dqn_forward(x, w1, w_pack, b_pack, *, num_actions):
    """x: [B, num_obs] f32.  Returns [B, num_actions] f32 Q-values."""
    batch, num_obs = x.shape
    num_tc = _num_tensorcores_per_chip()
    tile_b, b_pad, grid = _choose_tiling(batch, num_tc)
    if b_pad != batch:
        x = jnp.pad(x, ((0, b_pad - batch), (0, 0)))

    kernel = functools.partial(_dqn_mlp_kernel, num_actions=num_actions)

    out_padded = pl.pallas_call(
        kernel,
        out_shape=jax.ShapeDtypeStruct((b_pad, num_actions), jnp.float32),
        grid_spec=pltpu.PrefetchScalarGridSpec(
            num_scalar_prefetch=0,
            grid=(grid,),
            in_specs=[
                # streamed activations: one [tile_b, num_obs] tile per grid step
                pl.BlockSpec((tile_b, num_obs), lambda i: (i, 0)),
                # parameters: constant index_maps -> fetched once, VMEM-resident
                pl.BlockSpec((num_obs, PAD), lambda i: (0, 0)),
                pl.BlockSpec((4, PAD, PAD), lambda i: (0, 0, 0)),
                pl.BlockSpec((5, 1, PAD), lambda i: (0, 0, 0)),
            ],
            out_specs=pl.BlockSpec((tile_b, num_actions), lambda i: (i, 0)),
        ),
        compiler_params=pltpu.CompilerParams(
            dimension_semantics=("parallel",)),
    )(x, w1, w_pack, b_pack)

    # padded rows contain junk (bias-propagated), so slice them off here.
    return out_padded[:batch]


def init_params(key, num_obs, num_actions):
    """PyTorch-default-style init: uniform(-1/sqrt(fan_in), 1/sqrt(fan_in)).

    Weights stored [in, out]; biases [1, out]; all f32 (packed to bf16 later).
    """
    dims = [num_obs, 128, 64, 32, 16, num_actions]
    params = []
    for i in range(len(dims) - 1):
        fan_in, fan_out = dims[i], dims[i + 1]
        key, kw, kb = jax.random.split(key, 3)
        bound = 1.0 / (fan_in ** 0.5)
        w = jax.random.uniform(kw, (fan_in, fan_out), jnp.float32, -bound, bound)
        b = jax.random.uniform(kb, (1, fan_out), jnp.float32, -bound, bound)
        params.append((w, b))
    return params


def pack_params(params):
    """Pack 5 (W, b) pairs into 3 operands, zero-padded to 128 lanes.

    Returns (w1 [num_obs,128] bf16, w_pack [4,128,128] bf16, b_pack [5,1,128] f32).
    Zero padding is exact: padded input rows multiply zero weights, padded output
    columns get zero bias and stay zero through ReLU.
    """
    w1, b1 = params[0]
    w_pack = jnp.zeros((4, PAD, PAD), jnp.float32)
    b_pack = jnp.zeros((5, 1, PAD), jnp.float32)
    b_pack = b_pack.at[0, :, : b1.shape[1]].set(b1)
    for li, (w, b) in enumerate(params[1:]):
        w_pack = w_pack.at[li, : w.shape[0], : w.shape[1]].set(w)
        b_pack = b_pack.at[li + 1, :, : b.shape[1]].set(b)
    return w1.astype(jnp.bfloat16), w_pack.astype(jnp.bfloat16), b_pack


def reference_forward_f32(x, params):
    """Pure-f32 JAX reference of the PyTorch module's forward pass."""
    h = x
    for i, (w, b) in enumerate(params):
        h = h @ w + b
        if i < len(params) - 1:
            h = jnp.maximum(h, 0.0)
    return h


def reference_forward_bf16(x, params):
    """Reference emulating the kernel's bf16-input / f32-accumulate matmuls."""
    h = x
    for i, (w, b) in enumerate(params):
        h = jnp.dot(h.astype(jnp.bfloat16), w.astype(jnp.bfloat16),
                    preferred_element_type=jnp.float32) + b
        if i < len(params) - 1:
            h = jnp.maximum(h, 0.0)
    return h


if __name__ == "__main__":
    num_obs = 8
    num_actions = 4

    key = jax.random.PRNGKey(0)
    key, kp = jax.random.split(key)
    params = init_params(kp, num_obs, num_actions)
    w1, w_pack, b_pack = pack_params(params)

    # single small tile; a ragged batch (now one balanced tile / two on 2-TC chips);
    # and a multi-tile batch that exercises grid > 1 with minimal padding.
    for batch in (8, 1040, 2100):
        key, kx = jax.random.split(key)
        x = jax.random.normal(kx, (batch, num_obs), jnp.float32)

        out = dqn_forward(x, w1, w_pack, b_pack, num_actions=num_actions)
        out = jax.block_until_ready(out)
        assert out.shape == (batch, num_actions), out.shape

        ref_bf16 = reference_forward_bf16(x, params)
        ref_f32 = reference_forward_f32(x, params)
        # tight vs a bf16-emulating reference; loose vs the exact-f32 PyTorch math
        # (difference is the intentional bf16 MXU input cast).
        assert jnp.allclose(out, ref_bf16, atol=1e-2, rtol=1e-2), "mismatch vs bf16 reference"
        assert jnp.allclose(out, ref_f32, atol=5e-2, rtol=5e-2), "mismatch vs f32 reference"

    print("KERNEL_OK")
</pallas_src>

<mosaic_0001>
module attributes {stable_mosaic.version = 11 : i64} {
  func.func @_dqn_mlp_kernel(%arg0: i32, %arg1: memref<8x8xf32, #tpu.memory_space<vmem>>, %arg2: memref<8x128xbf16, #tpu.memory_space<vmem>>, %arg3: memref<4x128x128xbf16, #tpu.memory_space<vmem>>, %arg4: memref<5x1x128xf32, #tpu.memory_space<vmem>>, %arg5: memref<8x4xf32, #tpu.memory_space<vmem>>) attributes {dimension_semantics = [#tpu.dimension_semantics<parallel>], iteration_bounds = array<i64: 1>, scalar_prefetch = 0 : i64, scratch_operands = 0 : i64, tpu.core_type = #tpu.core_type<tc>, window_params = [{transform_indices = @transform_0, window_bounds = array<i64: 8, 8>}, {pipeline_mode = #tpu.pipeline_mode<synchronous>, transform_indices = @transform_1, window_bounds = array<i64: 8, 128>}, {pipeline_mode = #tpu.pipeline_mode<synchronous>, transform_indices = @transform_2, window_bounds = array<i64: 4, 128, 128>}, {pipeline_mode = #tpu.pipeline_mode<synchronous>, transform_indices = @transform_3, window_bounds = array<i64: 5, 1, 128>}, {transform_indices = @transform_4, window_bounds = array<i64: 8, 4>}]} {
    %c0 = arith.constant 0 : index
    %c0_0 = arith.constant 0 : index
    %0 = vector.load %arg1[%c0, %c0_0] : memref<8x8xf32, #tpu.memory_space<vmem>>, vector<8x8xf32>
    %1 = arith.truncf %0 : vector<8x8xf32> to vector<8x8xbf16>
    %c0_1 = arith.constant 0 : index
    %c0_2 = arith.constant 0 : index
    %2 = vector.load %arg2[%c0_1, %c0_2] : memref<8x128xbf16, #tpu.memory_space<vmem>>, vector<8x128xbf16>
    %cst = arith.constant dense<0.000000e+00> : vector<8x128xf32>
    %3 = tpu.matmul %1, %2, %cst {dimension_numbers = #tpu.dot_dimension_numbers<[1], [0], [0], [1], [0, 0, 1, 1], [], []>} : vector<8x8xbf16>, vector<8x128xbf16>, vector<8x128xf32> -> vector<8x128xf32>
    %c0_3 = arith.constant 0 : index
    %c0_4 = arith.constant 0 : index
    %c0_5 = arith.constant 0 : index
    %4 = vector.load %arg4[%c0_3, %c0_4, %c0_5] : memref<5x1x128xf32, #tpu.memory_space<vmem>>, vector<1x1x128xf32>
    %5 = vector.shape_cast %4 : vector<1x1x128xf32> to vector<1x128xf32>
    %6 = vector.broadcast %5 : vector<1x128xf32> to vector<8x128xf32>
    %7 = arith.addf %3, %6 : vector<8x128xf32>
    %cst_6 = arith.constant 0.000000e+00 : f32
    %8 = vector.broadcast %cst_6 : f32 to vector<8x128xf32>
    %9 = arith.maximumf %7, %8 : vector<8x128xf32>
    %10 = arith.truncf %9 : vector<8x128xf32> to vector<8x128xbf16>
    %c0_7 = arith.constant 0 : index
    %c0_8 = arith.constant 0 : index
    %c0_9 = arith.constant 0 : index
    %11 = vector.load %arg3[%c0_7, %c0_8, %c0_9] : memref<4x128x128xbf16, #tpu.memory_space<vmem>>, vector<1x128x128xbf16>
    %12 = vector.shape_cast %11 : vector<1x128x128xbf16> to vector<128x128xbf16>
    %cst_10 = arith.constant dense<0.000000e+00> : vector<8x128xf32>
    %13 = tpu.matmul %10, %12, %cst_10 {dimension_numbers = #tpu.dot_dimension_numbers<[1], [0], [0], [1], [0, 0, 1, 1], [], []>} : vector<8x128xbf16>, vector<128x128xbf16>, vector<8x128xf32> -> vector<8x128xf32>
    %c1 = arith.constant 1 : index
    %c0_11 = arith.constant 0 : index
    %c0_12 = arith.constant 0 : index
    %14 = vector.load %arg4[%c1, %c0_11, %c0_12] : memref<5x1x128xf32, #tpu.memory_space<vmem>>, vector<1x1x128xf32>
    %15 = vector.shape_cast %14 : vector<1x1x128xf32> to vector<1x128xf32>
    %16 = vector.broadcast %15 : vector<1x128xf32> to vector<8x128xf32>
    %17 = arith.addf %13, %16 : vector<8x128xf32>
    %cst_13 = arith.constant 0.000000e+00 : f32
    %18 = vector.broadcast %cst_13 : f32 to vector<8x128xf32>
    %19 = arith.maximumf %17, %18 : vector<8x128xf32>
    %20 = arith.truncf %19 : vector<8x128xf32> to vector<8x128xbf16>
    %c1_14 = arith.constant 1 : index
    %c0_15 = arith.constant 0 : index
    %c0_16 = arith.constant 0 : index
    %21 = vector.load %arg3[%c1_14, %c0_15, %c0_16] : memref<4x128x128xbf16, #tpu.memory_space<vmem>>, vector<1x128x128xbf16>
    %22 = vector.shape_cast %21 : vector<1x128x128xbf16> to vector<128x128xbf16>
    %cst_17 = arith.constant dense<0.000000e+00> : vector<8x128xf32>
    %23 = tpu.matmul %20, %22, %cst_17 {dimension_numbers = #tpu.dot_dimension_numbers<[1], [0], [0], [1], [0, 0, 1, 1], [], []>} : vector<8x128xbf16>, vector<128x128xbf16>, vector<8x128xf32> -> vector<8x128xf32>
    %c2 = arith.constant 2 : index
    %c0_18 = arith.constant 0 : index
    %c0_19 = arith.constant 0 : index
    %24 = vector.load %arg4[%c2, %c0_18, %c0_19] : memref<5x1x128xf32, #tpu.memory_space<vmem>>, vector<1x1x128xf32>
    %25 = vector.shape_cast %24 : vector<1x1x128xf32> to vector<1x128xf32>
    %26 = vector.broadcast %25 : vector<1x128xf32> to vector<8x128xf32>
    %27 = arith.addf %23, %26 : vector<8x128xf32>
    %cst_20 = arith.constant 0.000000e+00 : f32
    %28 = vector.broadcast %cst_20 : f32 to vector<8x128xf32>
    %29 = arith.maximumf %27, %28 : vector<8x128xf32>
    %30 = arith.truncf %29 : vector<8x128xf32> to vector<8x128xbf16>
    %c2_21 = arith.constant 2 : index
    %c0_22 = arith.constant 0 : index
    %c0_23 = arith.constant 0 : index
    %31 = vector.load %arg3[%c2_21, %c0_22, %c0_23] : memref<4x128x128xbf16, #tpu.memory_space<vmem>>, vector<1x128x128xbf16>
    %32 = vector.shape_cast %31 : vector<1x128x128xbf16> to vector<128x128xbf16>
    %cst_24 = arith.constant dense<0.000000e+00> : vector<8x128xf32>
    %33 = tpu.matmul %30, %32, %cst_24 {dimension_numbers = #tpu.dot_dimension_numbers<[1], [0], [0], [1], [0, 0, 1, 1], [], []>} : vector<8x128xbf16>, vector<128x128xbf16>, vector<8x128xf32> -> vector<8x128xf32>
    %c3 = arith.constant 3 : index
    %c0_25 = arith.constant 0 : index
    %c0_26 = arith.constant 0 : index
    %34 = vector.load %arg4[%c3, %c0_25, %c0_26] : memref<5x1x128xf32, #tpu.memory_space<vmem>>, vector<1x1x128xf32>
    %35 = vector.shape_cast %34 : vector<1x1x128xf32> to vector<1x128xf32>
    %36 = vector.broadcast %35 : vector<1x128xf32> to vector<8x128xf32>
    %37 = arith.addf %33, %36 : vector<8x128xf32>
    %cst_27 = arith.constant 0.000000e+00 : f32
    %38 = vector.broadcast %cst_27 : f32 to vector<8x128xf32>
    %39 = arith.maximumf %37, %38 : vector<8x128xf32>
    %40 = arith.truncf %39 : vector<8x128xf32> to vector<8x128xbf16>
    %c3_28 = arith.constant 3 : index
    %c0_29 = arith.constant 0 : index
    %c0_30 = arith.constant 0 : index
    %41 = vector.load %arg3[%c3_28, %c0_29, %c0_30] : memref<4x128x128xbf16, #tpu.memory_space<vmem>>, vector<1x128x128xbf16>
    %42 = vector.shape_cast %41 : vector<1x128x128xbf16> to vector<128x128xbf16>
    %cst_31 = arith.constant dense<0.000000e+00> : vector<8x128xf32>
    %43 = tpu.matmul %40, %42, %cst_31 {dimension_numbers = #tpu.dot_dimension_numbers<[1], [0], [0], [1], [0, 0, 1, 1], [], []>} : vector<8x128xbf16>, vector<128x128xbf16>, vector<8x128xf32> -> vector<8x128xf32>
    %c4 = arith.constant 4 : index
    %c0_32 = arith.constant 0 : index
    %c0_33 = arith.constant 0 : index
    %44 = vector.load %arg4[%c4, %c0_32, %c0_33] : memref<5x1x128xf32, #tpu.memory_space<vmem>>, vector<1x1x128xf32>
    %45 = vector.shape_cast %44 : vector<1x1x128xf32> to vector<1x128xf32>
    %46 = vector.broadcast %45 : vector<1x128xf32> to vector<8x128xf32>
    %47 = arith.addf %43, %46 : vector<8x128xf32>
    %48 = vector.extract_strided_slice %47 {offsets = [0, 0], sizes = [8, 4], strides = [1, 1]} : vector<8x128xf32> to vector<8x4xf32>
    %c0_34 = arith.constant 0 : index
    %c0_35 = arith.constant 0 : index
    %49 = vector.load %arg5[%c0_34, %c0_35] : memref<8x4xf32, #tpu.memory_space<vmem>>, vector<8x4xf32>
    tpu.vector_store %arg5[%c0_34, %c0_35], %48 {strides = array<i32>} : memref<8x4xf32, #tpu.memory_space<vmem>>, vector<8x4xf32>,
    return
  }
  func.func @transform_0(%arg0: i32) -> (i32, i32) {
    %c0_i32 = arith.constant 0 : i32
    %c0_i32_0 = arith.constant 0 : i32
    return %arg0, %c0_i32 : i32, i32
  }
  func.func @transform_1(%arg0: i32) -> (i32, i32) {
    %c0_i32 = arith.constant 0 : i32
    %c0_i32_0 = arith.constant 0 : i32
    %c0_i32_1 = arith.constant 0 : i32
    return %c0_i32, %c0_i32_0 : i32, i32
  }
  func.func @transform_2(%arg0: i32) -> (i32, i32, i32) {
    %c0_i32 = arith.constant 0 : i32
    %c0_i32_0 = arith.constant 0 : i32
    %c0_i32_1 = arith.constant 0 : i32
    %c0_i32_2 = arith.constant 0 : i32
    return %c0_i32, %c0_i32_0, %c0_i32_1 : i32, i32, i32
  }
  func.func @transform_3(%arg0: i32) -> (i32, i32, i32) {
    %c0_i32 = arith.constant 0 : i32
    %c0_i32_0 = arith.constant 0 : i32
    %c0_i32_1 = arith.constant 0 : i32
    %c0_i32_2 = arith.constant 0 : i32
    return %c0_i32, %c0_i32_0, %c0_i32_1 : i32, i32, i32
  }
  func.func @transform_4(%arg0: i32) -> (i32, i32) {
    %c0_i32 = arith.constant 0 : i32
    %c0_i32_0 = arith.constant 0 : i32
    return %arg0, %c0_i32 : i32, i32
  }
}

</mosaic_0001>

<llo_original>
// kernel: dqn_forward.1
$region0: #{dqn_forward.1}
  #allocation0 [shape = 'u32[]', space=smem, size = 0x4, offset = 0x4, fixed_abs, tag = 'smem constant byte address 0x4 - core index']
  #allocation1 [shape = 'u32[144,128]{1,0:T(1,128)}', space=vmem, size = 0x12000, scoped, tag = 'internal scratch']
  %s0 = inlined_call_operand.hbm [shape: f32[8,8], index: 0, kind: input, shape index: {}]
  %s1 = inlined_call_operand.hbm [shape: bf16[8,128], index: 1, kind: input, shape index: {}]
  %s2 = inlined_call_operand.hbm [shape: bf16[4,128,128], index: 2, kind: input, shape index: {}]
  %s3 = inlined_call_operand.vmem [shape: f32[5,1,128], index: 3, kind: input, shape index: {}]
  %s4 = inlined_call_operand.vmem [shape: f32[8,4], index: 4, kind: output, shape index: {}]
  %s5 = sld [smem:[#allocation0]]
  $region38: #{dqn_forward.1} parent=0
    _
  %s7 = ssub.s32 1, %s5
  %s8 = scalar_select 0, %s7, %s5
  $region1: #{dqn_forward.1} parent=0
    #allocation2 [shape = 'u8[4096]{0}', space=vmem, size = 0x1000, scoped, tag = 'input window, operand 0, single buffered']
    #allocation3 [shape = 's32[1]{0}', space=sflag, size = 0x4, scoped, tag = 'scoped memory for dqn_forward.1']
    #allocation4 [shape = 'u8[2048]{0}', space=vmem, size = 0x800, scoped, tag = 'input window, operand 1, single buffered']
    #allocation5 [shape = 's32[1]{0}', space=sflag, size = 0x4, scoped, tag = 'scoped memory for dqn_forward.1']
    #allocation6 [shape = 'u8[131072]{0}', space=vmem, size = 0x20000, scoped, tag = 'input window, operand 2, single buffered']
    %9 = vsyncpa [#allocation3], 0
    %10 = vsyncpa [#allocation5], 0
    // Predicated region
    $region2: #{dqn_forward.1} parent=1 // pred_check
      _
    $region3: #{dqn_forward.1} parent=1 // pred_check_branch
      %12 = sbr.rel (0) target = $region5
    $region4: #{dqn_forward.1} parent=1 // pred_region
      %s14 = ssub.s32 128, 128
      %15 = vsyncadd [#allocation3], %s14
      %s17 = sshll.u32 [#allocation2], 4
      %s18 = int_to_ptr.vmem [resolvable:$true] %s17
      %20 = dma.hbm_to_vmem [thread:$0]  %s0, 128, %s18, [#allocation3]
    $region5: #{dqn_forward.1} parent=1 // pred_fallthru
      _
    // Predicated region
    $region6: #{dqn_forward.1} parent=1 // pred_check
      _
    $region7: #{dqn_forward.1} parent=1 // pred_check_branch
      %22 = sbr.rel (0) target = $region9
    $region8: #{dqn_forward.1} parent=1 // pred_region
      %s24 = ssub.s32 64, 64
      %25 = vsyncadd [#allocation5], %s24
      %s27 = sshll.u32 [#allocation4], 4
      %s28 = int_to_ptr.vmem [resolvable:$true] %s27
      %30 = dma.hbm_to_vmem [thread:$0]  %s1, 64, %s28, [#allocation5]
    $region9: #{dqn_forward.1} parent=1 // pred_fallthru
      _
    // Predicated region
    $region10: #{dqn_forward.1} parent=1 // pred_check
      _
    $region11: #{dqn_forward.1} parent=1 // pred_check_branch
      %32 = sbr.rel (0) target = $region13
    $region12: #{dqn_forward.1} parent=1 // pred_region
      %s34 = ssub.s32 4096, 4096
      %35 = vsyncadd [#allocation5], %s34
      %s36 = sshll.u32 [#allocation6], 4
      %s37 = int_to_ptr.vmem [resolvable:$true] %s36
      %42 = dma.hbm_to_vmem [thread:$0]  %s2, 4096, %s37, [#allocation5], 64, 64, 4
    $region13: #{dqn_forward.1} parent=1 // pred_fallthru
      _
    // Predicated region
    $region14: #{dqn_forward.1} parent=1 // pred_check
      _
    $region15: #{dqn_forward.1} parent=1 // pred_check_branch
      %44 = sbr.rel (0) target = $region17
    $region16: #{dqn_forward.1} parent=1 // pred_region
      _
    $region17: #{dqn_forward.1} parent=1 // pred_fallthru
      _
    // Predicated region
    $region18: #{dqn_forward.1} parent=1 // pred_check
      _
    $region19: #{dqn_forward.1} parent=1 // pred_check_branch
      %46 = sbr.rel (0) target = $region21
    $region20: #{dqn_forward.1} parent=1 // pred_region
      %47 = dma.done [#allocation3], 128
    $region21: #{dqn_forward.1} parent=1 // pred_fallthru
      _
    // Predicated region
    $region22: #{dqn_forward.1} parent=1 // pred_check
      _
    $region23: #{dqn_forward.1} parent=1 // pred_check_branch
      %49 = sbr.rel (0) target = $region25
    $region24: #{dqn_forward.1} parent=1 // pred_region
      %50 = dma.done [#allocation5], 64
    $region25: #{dqn_forward.1} parent=1 // pred_fallthru
      _
    // Predicated region
    $region26: #{dqn_forward.1} parent=1 // pred_check
      _
    $region27: #{dqn_forward.1} parent=1 // pred_check_branch
      %52 = sbr.rel (0) target = $region29
    $region28: #{dqn_forward.1} parent=1 // pred_region
      %53 = dma.done [#allocation5], 4096
    $region29: #{dqn_forward.1} parent=1 // pred_fallthru
      _
    %v55 = vld [vmem:[#allocation2] sm:$0xff]
    %v56 = vpack.c.bf16 %v55, %v55
    %v57 = vld [vmem:[#allocation4] sm:$0xf]
    %v58 = vld [vmem:[%s3] sm:$0x1]
    %v60 = vlaneseq
    %v61 = vshrl.u32 %v60, 7
    %v62 = vsub.s32 0, %v61
    %v63 = vrot.slane %v58, %v62
    %vm65 = vcmask 64512
    %v67 = vsel %vm65, %v56, 0
    %vm69 = vcmask 1043456
    %v71 = vsel %vm69, %v57, 0
    %73 = vmatprep.subr.bf16.mxu0 0
    %74 = vmatpush1.bf16.msra.mxu0 0
    %75 = vmatprep.subr.bf16.mxu0 0
    %76 = vmatpush1.bf16.msra.mxu0 0
    %77 = vmatprep.subr.bf16.mxu0 0
    %78 = vmatpush1.bf16.msra.mxu0 0
    %79 = vmatprep.subr.bf16.mxu0 0
    %80 = vmatpush1.bf16.msra.mxu0 0
    %81 = vmatprep.subr.bf16.mxu0 0
    %82 = vmatpush1.bf16.msra.mxu0 0
    %83 = vmatprep.subr.bf16.mxu0 0
    %84 = vmatpush1.bf16.msra.mxu0 0
    %85 = vmatprep.subr.bf16.mxu0 0
    %86 = vmatpush1.bf16.msra.mxu0 0
    %87 = vmatprep.subr.bf16.mxu0 0
    %88 = vmatpush1.bf16.msra.mxu0 %v71
    %89 = vmatprep.subr.bf16.mxu0 0
    %90 = vmatpush2.bf16.msra.mxu0 0
    %91 = vmatprep.subr.bf16.mxu0 0
    %92 = vmatpush2.bf16.msra.mxu0 0
    %93 = vmatprep.subr.bf16.mxu0 0
    %94 = vmatpush2.bf16.msra.mxu0 0
    %95 = vmatprep.subr.bf16.mxu0 0
    %96 = vmatpush2.bf16.msra.mxu0 0
    %97 = vmatprep.subr.bf16.mxu0 0
    %98 = vmatpush2.bf16.msra.mxu0 0
    %99 = vmatprep.subr.bf16.mxu0 0
    %100 = vmatpush2.bf16.msra.mxu0 0
    %101 = vmatprep.subr.bf16.mxu0 0
    %102 = vmatpush2.bf16.msra.mxu0 0
    %103 = vmatprep.subr.bf16.mxu0 0
    %104 = vmatpush2.bf16.msra.mxu0 0
    %105 = vmatprep.mubr.bf16.mxu0 0
    %106 = vmatmul.mubr.bf16.gmra.mxu0 %v67
    %v107 = vpop.f32.mrf.mxu0
    %v108 = vadd.f32 %v63, %v107
    %v109 = vpop.f32.mrf.mxu0
    %v110 = vpop.f32.mrf.mxu0
    %v111 = vpop.f32.mrf.mxu0
    %112 = vdwg.mxu0
    %v113 = vmax.f32 %v108, 0.0
    %v114 = vpack.c.bf16 %v113, %v113
    %v115 = vld [vmem:[#allocation6] sm:$0xf]
    %v116 = vld [vmem:[#allocation6 + $0x4] sm:$0xf]
    %v117 = vld [vmem:[#allocation6 + $0x8] sm:$0xf]
    %v118 = vld [vmem:[#allocation6 + $0xc] sm:$0xf]
    %v119 = vld [vmem:[#allocation6 + $0x10] sm:$0xf]
    %v120 = vld [vmem:[#allocation6 + $0x14] sm:$0xf]
    %v121 = vld [vmem:[#allocation6 + $0x18] sm:$0xf]
    %v122 = vld [vmem:[#allocation6 + $0x1c] sm:$0xf]
    %v123 = vld [vmem:[#allocation6 + $0x20] sm:$0xf]
    %v124 = vld [vmem:[#allocation6 + $0x24] sm:$0xf]
    %v125 = vld [vmem:[#allocation6 + $0x28] sm:$0xf]
    %v126 = vld [vmem:[#allocation6 + $0x2c] sm:$0xf]
    %v127 = vld [vmem:[#allocation6 + $0x30] sm:$0xf]
    %v128 = vld [vmem:[#allocation6 + $0x34] sm:$0xf]
    %v129 = vld [vmem:[#allocation6 + $0x38] sm:$0xf]
    %v130 = vld [vmem:[#allocation6 + $0x3c] sm:$0xf]
    %s131 = scalar_lea.vmem %s3, 1
    %v132 = vld [vmem:[%s131] sm:$0x1]
    %v134 = vlaneseq
    %v135 = vshrl.u32 %v134, 7
    %v136 = vsub.s32 0, %v135
    %v137 = vrot.slane %v132, %v136
    %v155 = vunpack.c.l.b16 %v115
    %v156 = vunpack.c.l.b16 %v116
    %v157 = vunpack.c.l.b16 %v117
    %v158 = vunpack.c.l.b16 %v118
    %v159 = vunpack.c.l.b16 %v119
    %v160 = vunpack.c.l.b16 %v120
    %v161 = vunpack.c.l.b16 %v121
    %v162 = vunpack.c.l.b16 %v122
    %v163 = vunpack.c.l.b16 %v123
    %v164 = vunpack.c.l.b16 %v124
    %v165 = vunpack.c.l.b16 %v125
    %v166 = vunpack.c.l.b16 %v126
    %v167 = vunpack.c.l.b16 %v127
    %v168 = vunpack.c.l.b16 %v128
    %v169 = vunpack.c.l.b16 %v129
    %v170 = vunpack.c.l.b16 %v130
    %v171 = vpack.c.b16 %v156, %v155
    %v172 = vpack.c.b16 %v158, %v157
    %v173 = vpack.c.b16 %v160, %v159
    %v174 = vpack.c.b16 %v162, %v161
    %v175 = vpack.c.b16 %v164, %v163
    %v176 = vpack.c.b16 %v166, %v165
    %v177 = vpack.c.b16 %v168, %v167
    %v178 = vpack.c.b16 %v170, %v169
    %187 = vmatprep.subr.bf16.mxu0 0
    %188 = vmatpush1.bf16.msra.mxu0 %v178
    %189 = vmatprep.subr.bf16.mxu0 0
    %190 = vmatpush1.bf16.msra.mxu0 %v177
    %191 = vmatprep.subr.bf16.mxu0 0
    %192 = vmatpush1.bf16.msra.mxu0 %v176
    %193 = vmatprep.subr.bf16.mxu0 0
    %194 = vmatpush1.bf16.msra.mxu0 %v175
    %195 = vmatprep.subr.bf16.mxu0 0
    %196 = vmatpush1.bf16.msra.mxu0 %v174
    %197 = vmatprep.subr.bf16.mxu0 0
    %198 = vmatpush1.bf16.msra.mxu0 %v173
    %199 = vmatprep.subr.bf16.mxu0 0
    %200 = vmatpush1.bf16.msra.mxu0 %v172
    %201 = vmatprep.subr.bf16.mxu0 0
    %202 = vmatpush1.bf16.msra.mxu0 %v171
    %203 = vmatprep.subr.bf16.mxu0 0
    %204 = vmatpush2.bf16.msra.mxu0 0
    %205 = vmatprep.subr.bf16.mxu0 0
    %206 = vmatpush2.bf16.msra.mxu0 0
    %207 = vmatprep.subr.bf16.mxu0 0
    %208 = vmatpush2.bf16.msra.mxu0 0
    %209 = vmatprep.subr.bf16.mxu0 0
    %210 = vmatpush2.bf16.msra.mxu0 0
    %211 = vmatprep.subr.bf16.mxu0 0
    %212 = vmatpush2.bf16.msra.mxu0 0
    %213 = vmatprep.subr.bf16.mxu0 0
    %214 = vmatpush2.bf16.msra.mxu0 0
    %215 = vmatprep.subr.bf16.mxu0 0
    %216 = vmatpush2.bf16.msra.mxu0 0
    %217 = vmatprep.subr.bf16.mxu0 0
    %218 = vmatpush2.bf16.msra.mxu0 0
    %219 = vmatprep.mubr.bf16.mxu0 0
    %220 = vmatmul.mubr.bf16.gmra.mxu0 %v114
    %v221 = vpop.f32.mrf.mxu0
    %v222 = vadd.f32 %v137, %v221
    %v223 = vpop.f32.mrf.mxu0
    %v224 = vpop.f32.mrf.mxu0
    %v225 = vpop.f32.mrf.mxu0
    %226 = vdwg.mxu0
    %v227 = vmax.f32 %v222, 0.0
    %v228 = vpack.c.bf16 %v227, %v227
    %s229 = scalar_lea.vmem [#allocation6], 64
    %v230 = vld [vmem:[%s229] sm:$0xf]
    %v231 = vld [vmem:[%s229 + $0x4] sm:$0xf]
    %v232 = vld [vmem:[%s229 + $0x8] sm:$0xf]
    %v233 = vld [vmem:[%s229 + $0xc] sm:$0xf]
    %v234 = vld [vmem:[%s229 + $0x10] sm:$0xf]
    %v235 = vld [vmem:[%s229 + $0x14] sm:$0xf]
    %v236 = vld [vmem:[%s229 + $0x18] sm:$0xf]
    %v237 = vld [vmem:[%s229 + $0x1c] sm:$0xf]
    %v238 = vld [vmem:[%s229 + $0x20] sm:$0xf]
    %v239 = vld [vmem:[%s229 + $0x24] sm:$0xf]
    %v240 = vld [vmem:[%s229 + $0x28] sm:$0xf]
    %v241 = vld [vmem:[%s229 + $0x2c] sm:$0xf]
    %v242 = vld [vmem:[%s229 + $0x30] sm:$0xf]
    %v243 = vld [vmem:[%s229 + $0x34] sm:$0xf]
    %v244 = vld [vmem:[%s229 + $0x38] sm:$0xf]
    %v245 = vld [vmem:[%s229 + $0x3c] sm:$0xf]
    %s246 = scalar_lea.vmem %s3, 2
    %v247 = vld [vmem:[%s246] sm:$0x1]
    %v249 = vlaneseq
    %v250 = vshrl.u32 %v249, 7
    %v251 = vsub.s32 0, %v250
    %v252 = vrot.slane %v247, %v251
    %v270 = vunpack.c.l.b16 %v230
    %v271 = vunpack.c.l.b16 %v231
    %v272 = vunpack.c.l.b16 %v232
    %v273 = vunpack.c.l.b16 %v233
    %v274 = vunpack.c.l.b16 %v234
    %v275 = vunpack.c.l.b16 %v235
    %v276 = vunpack.c.l.b16 %v236
    %v277 = vunpack.c.l.b16 %v237
    %v278 = vunpack.c.l.b16 %v238
    %v279 = vunpack.c.l.b16 %v239
    %v280 = vunpack.c.l.b16 %v240
    %v281 = vunpack.c.l.b16 %v241
    %v282 = vunpack.c.l.b16 %v242
    %v283 = vunpack.c.l.b16 %v243
    %v284 = vunpack.c.l.b16 %v244
    %v285 = vunpack.c.l.b16 %v245
    %v286 = vpack.c.b16 %v271, %v270
    %v287 = vpack.c.b16 %v273, %v272
    %v288 = vpack.c.b16 %v275, %v274
    %v289 = vpack.c.b16 %v277, %v276
    %v290 = vpack.c.b16 %v279, %v278
    %v291 = vpack.c.b16 %v281, %v280
    %v292 = vpack.c.b16 %v283, %v282
    %v293 = vpack.c.b16 %v285, %v284
    %302 = vmatprep.subr.bf16.mxu0 0
    %303 = vmatpush1.bf16.msra.mxu0 %v293
    %304 = vmatprep.subr.bf16.mxu0 0
    %305 = vmatpush1.bf16.msra.mxu0 %v292
    %306 = vmatprep.subr.bf16.mxu0 0
    %307 = vmatpush1.bf16.msra.mxu0 %v291
    %308 = vmatprep.subr.bf16.mxu0 0
    %309 = vmatpush1.bf16.msra.mxu0 %v290
    %310 = vmatprep.subr.bf16.mxu0 0
    %311 = vmatpush1.bf16.msra.mxu0 %v289
    %312 = vmatprep.subr.bf16.mxu0 0
    %313 = vmatpush1.bf16.msra.mxu0 %v288
    %314 = vmatprep.subr.bf16.mxu0 0
    %315 = vmatpush1.bf16.msra.mxu0 %v287
    %316 = vmatprep.subr.bf16.mxu0 0
    %317 = vmatpush1.bf16.msra.mxu0 %v286
    %318 = vmatprep.subr.bf16.mxu0 0
    %319 = vmatpush2.bf16.msra.mxu0 0
    %320 = vmatprep.subr.bf16.mxu0 0
    %321 = vmatpush2.bf16.msra.mxu0 0
    %322 = vmatprep.subr.bf16.mxu0 0
    %323 = vmatpush2.bf16.msra.mxu0 0
    %324 = vmatprep.subr.bf16.mxu0 0
    %325 = vmatpush2.bf16.msra.mxu0 0
    %326 = vmatprep.subr.bf16.mxu0 0
    %327 = vmatpush2.bf16.msra.mxu0 0
    %328 = vmatprep.subr.bf16.mxu0 0
    %329 = vmatpush2.bf16.msra.mxu0 0
    %330 = vmatprep.subr.bf16.mxu0 0
    %331 = vmatpush2.bf16.msra.mxu0 0
    %332 = vmatprep.subr.bf16.mxu0 0
    %333 = vmatpush2.bf16.msra.mxu0 0
    %334 = vmatprep.mubr.bf16.mxu0 0
    %335 = vmatmul.mubr.bf16.gmra.mxu0 %v228
    %v336 = vpop.f32.mrf.mxu0
    %v337 = vadd.f32 %v252, %v336
    %v338 = vpop.f32.mrf.mxu0
    %v339 = vpop.f32.mrf.mxu0
    %v340 = vpop.f32.mrf.mxu0
    %341 = vdwg.mxu0
    %v342 = vmax.f32 %v337, 0.0
    %v343 = vpack.c.bf16 %v342, %v342
    %s344 = scalar_lea.vmem [#allocation6], 128
    %v345 = vld [vmem:[%s344] sm:$0xf]
    %v346 = vld [vmem:[%s344 + $0x4] sm:$0xf]
    %v347 = vld [vmem:[%s344 + $0x8] sm:$0xf]
    %v348 = vld [vmem:[%s344 + $0xc] sm:$0xf]
    %v349 = vld [vmem:[%s344 + $0x10] sm:$0xf]
    %v350 = vld [vmem:[%s344 + $0x14] sm:$0xf]
    %v351 = vld [vmem:[%s344 + $0x18] sm:$0xf]
    %v352 = vld [vmem:[%s344 + $0x1c] sm:$0xf]
    %v353 = vld [vmem:[%s344 + $0x20] sm:$0xf]
    %v354 = vld [vmem:[%s344 + $0x24] sm:$0xf]
    %v355 = vld [vmem:[%s344 + $0x28] sm:$0xf]
    %v356 = vld [vmem:[%s344 + $0x2c] sm:$0xf]
    %v357 = vld [vmem:[%s344 + $0x30] sm:$0xf]
    %v358 = vld [vmem:[%s344 + $0x34] sm:$0xf]
    %v359 = vld [vmem:[%s344 + $0x38] sm:$0xf]
    %v360 = vld [vmem:[%s344 + $0x3c] sm:$0xf]
    %s361 = scalar_lea.vmem %s3, 3
    %v362 = vld [vmem:[%s361] sm:$0x1]
    %v364 = vlaneseq
    %v365 = vshrl.u32 %v364, 7
    %v366 = vsub.s32 0, %v365
    %v367 = vrot.slane %v362, %v366
    %v385 = vunpack.c.l.b16 %v345
    %v386 = vunpack.c.l.b16 %v346
    %v387 = vunpack.c.l.b16 %v347
    %v388 = vunpack.c.l.b16 %v348
    %v389 = vunpack.c.l.b16 %v349
    %v390 = vunpack.c.l.b16 %v350
    %v391 = vunpack.c.l.b16 %v351
    %v392 = vunpack.c.l.b16 %v352
    %v393 = vunpack.c.l.b16 %v353
    %v394 = vunpack.c.l.b16 %v354
    %v395 = vunpack.c.l.b16 %v355
    %v396 = vunpack.c.l.b16 %v356
    %v397 = vunpack.c.l.b16 %v357
    %v398 = vunpack.c.l.b16 %v358
    %v399 = vunpack.c.l.b16 %v359
    %v400 = vunpack.c.l.b16 %v360
    %v401 = vpack.c.b16 %v386, %v385
    %v402 = vpack.c.b16 %v388, %v387
    %v403 = vpack.c.b16 %v390, %v389
    %v404 = vpack.c.b16 %v392, %v391
    %v405 = vpack.c.b16 %v394, %v393
    %v406 = vpack.c.b16 %v396, %v395
    %v407 = vpack.c.b16 %v398, %v397
    %v408 = vpack.c.b16 %v400, %v399
    %417 = vmatprep.subr.bf16.mxu0 0
    %418 = vmatpush1.bf16.msra.mxu0 %v408
    %419 = vmatprep.subr.bf16.mxu0 0
    %420 = vmatpush1.bf16.msra.mxu0 %v407
    %421 = vmatprep.subr.bf16.mxu0 0
    %422 = vmatpush1.bf16.msra.mxu0 %v406
    %423 = vmatprep.subr.bf16.mxu0 0
    %424 = vmatpush1.bf16.msra.mxu0 %v405
    %425 = vmatprep.subr.bf16.mxu0 0
    %426 = vmatpush1.bf16.msra.mxu0 %v404
    %427 = vmatprep.subr.bf16.mxu0 0
    %428 = vmatpush1.bf16.msra.mxu0 %v403
    %429 = vmatprep.subr.bf16.mxu0 0
    %430 = vmatpush1.bf16.msra.mxu0 %v402
    %431 = vmatprep.subr.bf16.mxu0 0
    %432 = vmatpush1.bf16.msra.mxu0 %v401
    %433 = vmatprep.subr.bf16.mxu0 0
    %434 = vmatpush2.bf16.msra.mxu0 0
    %435 = vmatprep.subr.bf16.mxu0 0
    %436 = vmatpush2.bf16.msra.mxu0 0
    %437 = vmatprep.subr.bf16.mxu0 0
    %438 = vmatpush2.bf16.msra.mxu0 0
    %439 = vmatprep.subr.bf16.mxu0 0
    %440 = vmatpush2.bf16.msra.mxu0 0
    %441 = vmatprep.subr.bf16.mxu0 0
    %442 = vmatpush2.bf16.msra.mxu0 0
    %443 = vmatprep.subr.bf16.mxu0 0
    %444 = vmatpush2.bf16.msra.mxu0 0
    %445 = vmatprep.subr.bf16.mxu0 0
    %446 = vmatpush2.bf16.msra.mxu0 0
    %447 = vmatprep.subr.bf16.mxu0 0
    %448 = vmatpush2.bf16.msra.mxu0 0
    %449 = vmatprep.mubr.bf16.mxu0 0
    %450 = vmatmul.mubr.bf16.gmra.mxu0 %v343
    %v451 = vpop.f32.mrf.mxu0
    %v452 = vadd.f32 %v367, %v451
    %v453 = vpop.f32.mrf.mxu0
    %v454 = vpop.f32.mrf.mxu0
    %v455 = vpop.f32.mrf.mxu0
    %456 = vdwg.mxu0
    %v457 = vmax.f32 %v452, 0.0
    %v458 = vpack.c.bf16 %v457, %v457
    %s459 = scalar_lea.vmem [#allocation6], 192
    %v460 = vld [vmem:[%s459] sm:$0xf]
    %v461 = vld [vmem:[%s459 + $0x4] sm:$0xf]
    %v462 = vld [vmem:[%s459 + $0x8] sm:$0xf]
    %v463 = vld [vmem:[%s459 + $0xc] sm:$0xf]
    %v464 = vld [vmem:[%s459 + $0x10] sm:$0xf]
    %v465 = vld [vmem:[%s459 + $0x14] sm:$0xf]
    %v466 = vld [vmem:[%s459 + $0x18] sm:$0xf]
    %v467 = vld [vmem:[%s459 + $0x1c] sm:$0xf]
    %v468 = vld [vmem:[%s459 + $0x20] sm:$0xf]
    %v469 = vld [vmem:[%s459 + $0x24] sm:$0xf]
    %v470 = vld [vmem:[%s459 + $0x28] sm:$0xf]
    %v471 = vld [vmem:[%s459 + $0x2c] sm:$0xf]
    %v472 = vld [vmem:[%s459 + $0x30] sm:$0xf]
    %v473 = vld [vmem:[%s459 + $0x34] sm:$0xf]
    %v474 = vld [vmem:[%s459 + $0x38] sm:$0xf]
    %v475 = vld [vmem:[%s459 + $0x3c] sm:$0xf]
    %s476 = scalar_lea.vmem %s3, 4
    %v477 = vld [vmem:[%s476] sm:$0x1]
    %v479 = vlaneseq
    %v480 = vshrl.u32 %v479, 7
    %v481 = vsub.s32 0, %v480
    %v482 = vrot.slane %v477, %v481
    %v500 = vunpack.c.l.b16 %v460
    %v501 = vunpack.c.l.b16 %v461
    %v502 = vunpack.c.l.b16 %v462
    %v503 = vunpack.c.l.b16 %v463
    %v504 = vunpack.c.l.b16 %v464
    %v505 = vunpack.c.l.b16 %v465
    %v506 = vunpack.c.l.b16 %v466
    %v507 = vunpack.c.l.b16 %v467
    %v508 = vunpack.c.l.b16 %v468
    %v509 = vunpack.c.l.b16 %v469
    %v510 = vunpack.c.l.b16 %v470
    %v511 = vunpack.c.l.b16 %v471
    %v512 = vunpack.c.l.b16 %v472
    %v513 = vunpack.c.l.b16 %v473
    %v514 = vunpack.c.l.b16 %v474
    %v515 = vunpack.c.l.b16 %v475
    %v516 = vpack.c.b16 %v501, %v500
    %v517 = vpack.c.b16 %v503, %v502
    %v518 = vpack.c.b16 %v505, %v504
    %v519 = vpack.c.b16 %v507, %v506
    %v520 = vpack.c.b16 %v509, %v508
    %v521 = vpack.c.b16 %v511, %v510
    %v522 = vpack.c.b16 %v513, %v512
    %v523 = vpack.c.b16 %v515, %v514
    %532 = vmatprep.subr.bf16.mxu0 0
    %533 = vmatpush1.bf16.msra.mxu0 %v523
    %534 = vmatprep.subr.bf16.mxu0 0
    %535 = vmatpush1.bf16.msra.mxu0 %v522
    %536 = vmatprep.subr.bf16.mxu0 0
    %537 = vmatpush1.bf16.msra.mxu0 %v521
    %538 = vmatprep.subr.bf16.mxu0 0
    %539 = vmatpush1.bf16.msra.mxu0 %v520
    %540 = vmatprep.subr.bf16.mxu0 0
    %541 = vmatpush1.bf16.msra.mxu0 %v519
    %542 = vmatprep.subr.bf16.mxu0 0
    %543 = vmatpush1.bf16.msra.mxu0 %v518
    %544 = vmatprep.subr.bf16.mxu0 0
    %545 = vmatpush1.bf16.msra.mxu0 %v517
    %546 = vmatprep.subr.bf16.mxu0 0
    %547 = vmatpush1.bf16.msra.mxu0 %v516
    %548 = vmatprep.subr.bf16.mxu0 0
    %549 = vmatpush2.bf16.msra.mxu0 0
    %550 = vmatprep.subr.bf16.mxu0 0
    %551 = vmatpush2.bf16.msra.mxu0 0
    %552 = vmatprep.subr.bf16.mxu0 0
    %553 = vmatpush2.bf16.msra.mxu0 0
    %554 = vmatprep.subr.bf16.mxu0 0
    %555 = vmatpush2.bf16.msra.mxu0 0
    %556 = vmatprep.subr.bf16.mxu0 0
    %557 = vmatpush2.bf16.msra.mxu0 0
    %558 = vmatprep.subr.bf16.mxu0 0
    %559 = vmatpush2.bf16.msra.mxu0 0
    %560 = vmatprep.subr.bf16.mxu0 0
    %561 = vmatpush2.bf16.msra.mxu0 0
    %562 = vmatprep.subr.bf16.mxu0 0
    %563 = vmatpush2.bf16.msra.mxu0 0
    %564 = vmatprep.mubr.bf16.mxu0 0
    %565 = vmatmul.mubr.bf16.gmra.mxu0 %v458
    %v566 = vpop.f32.mrf.mxu0
    %v567 = vadd.f32 %v482, %v566
    %v568 = vpop.f32.mrf.mxu0
    %v569 = vpop.f32.mrf.mxu0
    %v570 = vpop.f32.mrf.mxu0
    %571 = vdwg.mxu0
    %vm572 = vcmask 31744
    %573 = vst.msk [vmem:[%s4] sm:$0xff] %vm572, %v567
    // Predicated region
    $region30: #{dqn_forward.1} parent=1 // pred_check
      _
    $region31: #{dqn_forward.1} parent=1 // pred_check_branch
      %575 = sbr.rel (0) target = $region33
    $region32: #{dqn_forward.1} parent=1 // pred_region
      _
    $region33: #{dqn_forward.1} parent=1 // pred_fallthru
      _
    // Predicated region
    $region34: #{dqn_forward.1} parent=1 // pred_check
      _
    $region35: #{dqn_forward.1} parent=1 // pred_check_branch
      %577 = sbr.rel (0) target = $region37
    $region36: #{dqn_forward.1} parent=1 // pred_region
      _
    $region37: #{dqn_forward.1} parent=1 // pred_fallthru
      _
    %578 = vsyncpa [#allocation3], 1
    %579 = vsyncpa [#allocation5], 1

</llo_original>
